<compile_context>
chip_gen: v5e
topology: v5e:2x2
jax: 0.10.0
libtpu: 0.0.40
codegen_flags: <defaults>
</compile_context>

<pallas_src>
import jax
import jax.numpy as jnp
from jax.experimental import pallas as pl
from jax.experimental.pallas import tpu as pltpu


def _linear_add_kernel(x_ref, w_ref, other_ref, o_ref):
    """out = x @ W^T + bias + other, as K scalar*vector VPU FMAs.

    x_ref     : SMEM (K,)     f32  -- tiny activation row, read as scalars
    w_ref     : VMEM (K+1, N) f32  -- rows 0..K-1: W^T ; row K: bias
    other_ref : VMEM (1, N)   f32  -- `other` operand, unmodified
    o_ref     : VMEM (1, N)   f32
    """
    K = w_ref.shape[0] - 1
    # Start the accumulator from `other` + bias row (baked into the weight).
    acc = other_ref[...] + w_ref[K:K + 1, :]
    for k in range(K):                       # K == 3: fully unrolled, VPU only
        acc = acc + x_ref[k] * w_ref[k:k + 1, :]
    o_ref[...] = acc


def linear_add(x, weight_aug, other):
    """Forward pass of the PyTorch Model (`other` must not be None).

    x          : (1, K) float32
    weight_aug : (K+1, N) float32  -- [W^T ; bias], built once at init
    other      : (1, N) float32
    """
    M, K = x.shape
    Kp1, N = weight_aug.shape
    assert M == 1 and K + 1 == Kp1, "kernel specialized for the module's (1, K) input"
    assert other.shape == (M, N)

    x_flat = x.reshape(K)  # 1-D SMEM input: pads to 16 B instead of 4 KiB

    cost = pl.CostEstimate(
        flops=2 * K * N,
        bytes_accessed=(K + Kp1 * N + 2 * N) * 4,
        transcendentals=0,
    )

    return pl.pallas_call(
        _linear_add_kernel,
        out_shape=jax.ShapeDtypeStruct((M, N), x.dtype),
        in_specs=[
            pl.BlockSpec(memory_space=pltpu.MemorySpace.SMEM),  # x      -> scalar reads
            pl.BlockSpec(memory_space=pltpu.MemorySpace.VMEM),  # [W^T ; bias]
            pl.BlockSpec(memory_space=pltpu.MemorySpace.VMEM),  # other
        ],
        out_specs=pl.BlockSpec(memory_space=pltpu.MemorySpace.VMEM),
        cost_estimate=cost,
    )(x_flat, weight_aug, other)


if __name__ == "__main__":
    key = jax.random.PRNGKey(0)
    k_x, k_w, k_b, k_o = jax.random.split(key, 4)

    # Shapes implied by the module: Linear(3, 8), x1 = randn(1, 3)
    M, K, N = 1, 3, 8
    x1 = jax.random.normal(k_x, (M, K), dtype=jnp.float32)

    # PyTorch-style init (uniform bound 1/sqrt(fan_in)), weight in (N, K).
    bound = 1.0 / (K ** 0.5)
    weight = jax.random.uniform(k_w, (N, K), minval=-bound, maxval=bound,
                                dtype=jnp.float32)
    bias = jax.random.uniform(k_b, (N,), minval=-bound, maxval=bound,
                              dtype=jnp.float32)

    # One-time layout decision at "init": store the weight transposed (K, N)
    # with the bias appended as the last row -> (K+1, N).
    weight_aug = jnp.concatenate([jnp.asarray(weight.T), bias[None, :]], axis=0)

    # NOTE: in the PyTorch module, `other is None` raises (None + tensor), so
    # the only valid path is other != None; we supply a (1, 8) tensor.
    other = jax.random.normal(k_o, (M, N), dtype=jnp.float32)

    out = linear_add(x1, weight_aug, other)
    jax.block_until_ready(out)

    # Reference in plain JAX, same elementwise accumulation order (exact f32).
    ref = other + bias[None, :]
    for k in range(K):
        ref = ref + x1[0, k] * weight.T[k][None, :]
    assert jnp.allclose(out, ref, atol=1e-5, rtol=1e-5), (out, ref)
    print("KERNEL_OK")
</pallas_src>

<mosaic_0001>
module attributes {stable_mosaic.version = 11 : i64} {
  func.func @_linear_add_kernel(%arg0: memref<3xf32, #tpu.memory_space<smem>>, %arg1: memref<4x8xf32, #tpu.memory_space<vmem>>, %arg2: memref<1x8xf32, #tpu.memory_space<vmem>>, %arg3: memref<1x8xf32, #tpu.memory_space<vmem>>) attributes {dimension_semantics = [], scalar_prefetch = 0 : i64, scratch_operands = 0 : i64, tpu.core_type = #tpu.core_type<tc>} {
    %c0 = arith.constant 0 : index
    %c0_0 = arith.constant 0 : index
    %0 = vector.load %arg2[%c0, %c0_0] : memref<1x8xf32, #tpu.memory_space<vmem>>, vector<1x8xf32>
    %c3 = arith.constant 3 : index
    %c0_1 = arith.constant 0 : index
    %1 = vector.load %arg1[%c3, %c0_1] : memref<4x8xf32, #tpu.memory_space<vmem>>, vector<1x8xf32>
    %2 = arith.addf %0, %1 : vector<1x8xf32>
    %c0_2 = arith.constant 0 : index
    %3 = memref.load %arg0[%c0_2] : memref<3xf32, #tpu.memory_space<smem>>
    %c0_3 = arith.constant 0 : index
    %c0_4 = arith.constant 0 : index
    %4 = vector.load %arg1[%c0_3, %c0_4] : memref<4x8xf32, #tpu.memory_space<vmem>>, vector<1x8xf32>
    %5 = vector.broadcast %3 : f32 to vector<1x8xf32>
    %6 = arith.mulf %5, %4 : vector<1x8xf32>
    %7 = arith.addf %2, %6 : vector<1x8xf32>
    %c1 = arith.constant 1 : index
    %8 = memref.load %arg0[%c1] : memref<3xf32, #tpu.memory_space<smem>>
    %c1_5 = arith.constant 1 : index
    %c0_6 = arith.constant 0 : index
    %9 = vector.load %arg1[%c1_5, %c0_6] : memref<4x8xf32, #tpu.memory_space<vmem>>, vector<1x8xf32>
    %10 = vector.broadcast %8 : f32 to vector<1x8xf32>
    %11 = arith.mulf %10, %9 : vector<1x8xf32>
    %12 = arith.addf %7, %11 : vector<1x8xf32>
    %c2 = arith.constant 2 : index
    %13 = memref.load %arg0[%c2] : memref<3xf32, #tpu.memory_space<smem>>
    %c2_7 = arith.constant 2 : index
    %c0_8 = arith.constant 0 : index
    %14 = vector.load %arg1[%c2_7, %c0_8] : memref<4x8xf32, #tpu.memory_space<vmem>>, vector<1x8xf32>
    %15 = vector.broadcast %13 : f32 to vector<1x8xf32>
    %16 = arith.mulf %15, %14 : vector<1x8xf32>
    %17 = arith.addf %12, %16 : vector<1x8xf32>
    %c0_9 = arith.constant 0 : index
    %c0_10 = arith.constant 0 : index
    %18 = vector.load %arg3[%c0_9, %c0_10] : memref<1x8xf32, #tpu.memory_space<vmem>>, vector<1x8xf32>
    tpu.vector_store %arg3[%c0_9, %c0_10], %17 {strides = array<i32>} : memref<1x8xf32, #tpu.memory_space<vmem>>, vector<1x8xf32>,
    return
  }
}

</mosaic_0001>

<llo_original>
// kernel: tpu_custom_call.1
$region0: #{tpu_custom_call.1}
  #allocation0 [shape = 'u32[]', space=smem, size = 0x4, offset = 0x4, fixed_abs, tag = 'smem constant byte address 0x4 - core index']
  #allocation1 [shape = 'u32[72,128]{1,0:T(1,128)}', space=vmem, size = 0x9000, scoped, tag = 'internal scratch']
  %s0 = inlined_call_operand.hbm [shape: f32[3], index: 0, kind: input, shape index: {}]
  %s1 = inlined_call_operand.hbm [shape: f32[4,8], index: 1, kind: input, shape index: {}]
  %s2 = inlined_call_operand.vmem [shape: f32[1,8], index: 2, kind: input, shape index: {}]
  %s3 = inlined_call_operand.hbm [shape: f32[1,8], index: 3, kind: output, shape index: {}]
  %s4 = sld [smem:[#allocation0]]
  $region30: #{tpu_custom_call.1} parent=0
    _
  %s6 = ssub.s32 1, %s4
  %s7 = scalar_select 0, %s6, %s4
  $region1: #{tpu_custom_call.1} parent=0
    #allocation2 [shape = 'u8[512]{0}', space=smem, size = 0x200, scoped, tag = 'input window, operand 0, single buffered']
    #allocation3 [shape = 's32[1]{0}', space=sflag, size = 0x4, scoped, tag = 'scoped memory for tpu_custom_call.1']
    #allocation4 [shape = 's32[1]{0}', space=sflag, size = 0x4, scoped, tag = 'scoped memory for tpu_custom_call.1']
    #allocation5 [shape = 's32[1]{0}', space=sflag, size = 0x4, scoped, tag = 'scoped memory for tpu_custom_call.1']
    #allocation6 [shape = 'u8[2048]{0}', space=vmem, size = 0x800, scoped, tag = 'input window, operand 1, single buffered']
    #allocation7 [shape = 'u8[512]{0}', space=vmem, size = 0x400, scoped, tag = 'output window, operand 0, single buffered']
    %8 = vsyncpa [#allocation5], 0
    %9 = vsyncpa [#allocation3], 0
    %10 = vsyncpa [#allocation4], 0
    // Predicated region
    $region2: #{tpu_custom_call.1} parent=1 // pred_check
      _
    $region3: #{tpu_custom_call.1} parent=1 // pred_check_branch
      %12 = sbr.rel (0) target = $region5
    $region4: #{tpu_custom_call.1} parent=1 // pred_region
      %14 = vsyncadd [#allocation5], 0
      %s16 = sshll.u32 %s0, 4
      %s17 = int_to_ptr.hbm [resolvable:$true] %s16
      %19 = dma.hbm_to_smem %s17, 16, [#allocation2], [#allocation5]
    $region5: #{tpu_custom_call.1} parent=1 // pred_fallthru
      _
    // Predicated region
    $region6: #{tpu_custom_call.1} parent=1 // pred_check
      _
    $region7: #{tpu_custom_call.1} parent=1 // pred_check_branch
      %21 = sbr.rel (0) target = $region9
    $region8: #{tpu_custom_call.1} parent=1 // pred_region
      %23 = vsyncadd [#allocation3], 0
      %s25 = sshll.u32 %s1, 4
      %s26 = int_to_ptr.hbm [resolvable:$true] %s25
      %s27 = sshll.u32 [#allocation6], 4
      %s28 = int_to_ptr.vmem [resolvable:$true] %s27
      %30 = dma.hbm_to_vmem [thread:$0]  %s26, 64, %s28, [#allocation3]
    $region9: #{tpu_custom_call.1} parent=1 // pred_fallthru
      _
    // Predicated region
    $region10: #{tpu_custom_call.1} parent=1 // pred_check
      _
    $region11: #{tpu_custom_call.1} parent=1 // pred_check_branch
      %32 = sbr.rel (0) target = $region13
    $region12: #{tpu_custom_call.1} parent=1 // pred_region
      _
    $region13: #{tpu_custom_call.1} parent=1 // pred_fallthru
      _
    // Predicated region
    $region14: #{tpu_custom_call.1} parent=1 // pred_check
      _
    $region15: #{tpu_custom_call.1} parent=1 // pred_check_branch
      %34 = sbr.rel (0) target = $region17
    $region16: #{tpu_custom_call.1} parent=1 // pred_region
      %36 = dma.done [#allocation5], 16
    $region17: #{tpu_custom_call.1} parent=1 // pred_fallthru
      _
    // Predicated region
    $region18: #{tpu_custom_call.1} parent=1 // pred_check
      _
    $region19: #{tpu_custom_call.1} parent=1 // pred_check_branch
      %38 = sbr.rel (0) target = $region21
    $region20: #{tpu_custom_call.1} parent=1 // pred_region
      %40 = dma.done [#allocation3], 64
    $region21: #{tpu_custom_call.1} parent=1 // pred_fallthru
      _
    %41 = sfence
    %v42 = vld [vmem:[%s2] sm:$0x1]
    %v43 = vld [vmem:[#allocation6 + $0x3] sm:$0x1]
    %v44 = vadd.f32 %v42, %v43
    %s45 = sld [smem:[#allocation2]]
    %v46 = vld [vmem:[#allocation6] sm:$0x1]
    %v47 = vstv %s45
    %v48 = vmul.f32 %v47, %v46
    %v49 = vadd.f32 %v44, %v48
    %s50 = sld [smem:[#allocation2 + $0x1]]
    %v51 = vld [vmem:[#allocation6 + $0x1] sm:$0x1]
    %v52 = vstv %s50
    %v53 = vmul.f32 %v52, %v51
    %v54 = vadd.f32 %v49, %v53
    %s55 = sld [smem:[#allocation2 + $0x2]]
    %v56 = vld [vmem:[#allocation6 + $0x2] sm:$0x1]
    %v57 = vstv %s55
    %v58 = vmul.f32 %v57, %v56
    %v59 = vadd.f32 %v54, %v58
    %vm60 = vcmask 57344
    %61 = vst.msk [vmem:[#allocation7] sm:$0x1] %vm60, %v59
    // Predicated region
    $region22: #{tpu_custom_call.1} parent=1 // pred_check
      _
    $region23: #{tpu_custom_call.1} parent=1 // pred_check_branch
      %63 = sbr.rel (0) target = $region25
    $region24: #{tpu_custom_call.1} parent=1 // pred_region
      %65 = vsyncadd [#allocation4], 0
      %s67 = sshll.u32 [#allocation7], 4
      %s68 = int_to_ptr.vmem [resolvable:$true] %s67
      %s69 = sshll.u32 %s3, 4
      %s70 = int_to_ptr.hbm [resolvable:$true] %s69
      %72 = dma.vmem_to_hbm [thread:$0]  %s68, 16, %s70, [#allocation4]
    $region25: #{tpu_custom_call.1} parent=1 // pred_fallthru
      _
    // Predicated region
    $region26: #{tpu_custom_call.1} parent=1 // pred_check
      _
    $region27: #{tpu_custom_call.1} parent=1 // pred_check_branch
      %74 = sbr.rel (0) target = $region29
    $region28: #{tpu_custom_call.1} parent=1 // pred_region
      %76 = dma.done [#allocation4], 16
    $region29: #{tpu_custom_call.1} parent=1 // pred_fallthru
      _
    %77 = vsyncpa [#allocation3], 1
    %78 = vsyncpa [#allocation4], 1
    %79 = vsyncpa [#allocation5], 1

</llo_original>
